<compile_context>
chip_gen: v7x
topology: tpu7x:2x2x1
jax: 0.10.0
libtpu: 0.0.40
codegen_flags: <defaults>
</compile_context>

<pallas_src>
import functools

import jax
import jax.numpy as jnp
from jax.experimental import pallas as pl
from jax.experimental.pallas import tpu as pltpu


_BIG_D2 = 1e30  # sentinel "squared distance" for padded face columns (never selected)


def _round_up(x, m):
    return (x + m - 1) // m * m


def _cdiv(a, b):
    return (a + b - 1) // b


# ----------------------------- Pallas kernel -------------------------------- #
def _nearest_face_kernel(a1_ref, r1_ref, idx_ref, dmin_ref, imin_ref, *,
                         tile_nf, slice_faces):
    """Online argmin over face tiles of the (shifted) squared vertex-face distance."""
    f = pl.program_id(2)  # face-tile index (innermost, reduction axis)

    @pl.when(f == 0)
    def _():
        dmin_ref[...] = jnp.full(dmin_ref.shape, jnp.inf, dmin_ref.dtype)
        imin_ref[...] = jnp.zeros(imin_ref.shape, imin_ref.dtype)

    a1 = a1_ref[0]                                      # (tNc, 4)  [prev_xyz, 1]
    if slice_faces:
        # face slab is VMEM-resident; take the current lane-aligned chunk
        off = pl.multiple_of(f * tile_nf, 128)
        r1 = r1_ref[0, :, pl.ds(off, tile_nf)]          # (4, tNf)
    else:
        r1 = r1_ref[0]                                  # (4, tNf)

    # shifted squared distance |fcp|^2 - 2*prev.fcp  (|prev|^2 dropped — constant
    # per row, argmin-equivalent).  Single K=4 MXU matmul per tile.
    d2 = jnp.dot(a1, r1, preferred_element_type=jnp.float32)      # (tNc, tNf)

    lmin = jnp.min(d2, axis=-1, keepdims=True)                     # (tNc, 1)

    # face index carried as f32 (exact up to 2^24 faces); smallest index among
    # exact ties wins -> matches jnp.argmin's first-occurrence semantics.
    base = (f * tile_nf).astype(jnp.float32)
    col = base + jax.lax.broadcasted_iota(jnp.int32, (1, tile_nf), 1).astype(jnp.float32)
    ilocal = jnp.min(jnp.where(d2 <= lmin, col, jnp.inf), axis=-1, keepdims=True)

    # online-min carry across face tiles; strict '<' keeps earlier (smaller-index) tiles
    better = lmin < dmin_ref[...]
    imin_ref[...] = jnp.where(better, ilocal, imin_ref[...])
    dmin_ref[...] = jnp.where(better, lmin, dmin_ref[...])

    @pl.when(f == pl.num_programs(2) - 1)
    def _():
        idx_ref[0, 0] = imin_ref[...].astype(jnp.int32)


def nearest_obstacle_face_pallas(cloth_prev, fc_prev, *, tile_nc=512, tile_nf=2048,
                                 face_resident_bytes=8 * 1024 * 1024,
                                 vmem_limit_bytes=32 * 1024 * 1024):
    """Index of the nearest obstacle face centre for every cloth vertex: (B, Nc) int32."""
    B, Nc, _ = cloth_prev.shape
    Nf = fc_prev.shape[1]
    f32 = jnp.float32

    # tile sizes: cloth tile on sublanes (x8), face tile on lanes (x128)
    tile_nc = _round_up(min(tile_nc, _round_up(Nc, 8)), 8)
    tile_nf = _round_up(min(tile_nf, _round_up(Nf, 128)), 128)
    # v7x megacore: make sure the two parallel grid axes expose >= 2 work items
    if B * _cdiv(Nc, tile_nc) < 2 and Nc > 8:
        tile_nc = _round_up(_cdiv(Nc, 2), 8)

    nc_pad = _round_up(Nc, tile_nc)
    nf_pad = _round_up(Nf, tile_nf)
    n_ct = nc_pad // tile_nc
    n_ft = nf_pad // tile_nf

    # keep the whole face operand VMEM-resident per batch element when it fits
    # (double-buffered (8, nf_pad) f32 slab ~= 64*nf_pad bytes)
    faces_resident = 64 * nf_pad <= face_resident_bytes

    # centre coordinates per example (kills f32 cancellation in the expanded distance)
    centre = jnp.mean(fc_prev.astype(f32), axis=1, keepdims=True)
    prev_c = cloth_prev.astype(f32) - centre
    fcp_c = fc_prev.astype(f32) - centre

    # LHS A1 = [prev | 1]            (B, Nc, 4)
    # RHS R1 = [-2*fcp^T ; |fcp|^2]  (B, 4, Nf)   -> A1 @ R1 = |prev-fcp|^2 - |prev|^2
    a1 = jnp.concatenate([prev_c, jnp.ones((B, Nc, 1), f32)], axis=-1)
    r1 = jnp.concatenate([jnp.swapaxes(-2.0 * fcp_c, 1, 2),
                          jnp.sum(fcp_c * fcp_c, axis=-1)[:, None, :]], axis=1)

    # padding: cloth rows are sliced off in the wrapper, face cols get a huge-d2 sentinel
    if nc_pad != Nc:
        a1 = jnp.pad(a1, ((0, 0), (0, nc_pad - Nc), (0, 0)))
    if nf_pad != Nf:
        padf = nf_pad - Nf
        r1_pad = jnp.zeros((B, 4, padf), f32).at[:, 3, :].set(_BIG_D2)
        r1 = jnp.concatenate([r1, r1_pad], axis=2)

    slice_faces = faces_resident and n_ft > 1
    kernel = functools.partial(_nearest_face_kernel, tile_nf=tile_nf,
                               slice_faces=slice_faces)

    if faces_resident:
        # constant in (c, f): DMA'd once per batch element, stays VMEM-resident
        r1_spec = pl.BlockSpec((1, 4, nf_pad), lambda b, c, f: (b, 0, 0))
        face_bytes = B * nf_pad * 16
    else:
        r1_spec = pl.BlockSpec((1, 4, tile_nf), lambda b, c, f: (b, 0, f))
        face_bytes = B * n_ct * nf_pad * 16

    out = pl.pallas_call(
        kernel,
        out_shape=jax.ShapeDtypeStruct((B, n_ct, tile_nc, 1), jnp.int32),
        grid_spec=pltpu.PrefetchScalarGridSpec(
            num_scalar_prefetch=0,
            grid=(B, n_ct, n_ft),
            in_specs=[
                pl.BlockSpec((1, tile_nc, 4), lambda b, c, f: (b, c, 0)),
                r1_spec,
            ],
            out_specs=pl.BlockSpec((1, 1, tile_nc, 1), lambda b, c, f: (b, c, 0, 0)),
            scratch_shapes=[
                pltpu.VMEM((tile_nc, 1), f32),   # running min shifted-d2
                pltpu.VMEM((tile_nc, 1), f32),   # face index (as f32) at the running min
            ],
        ),
        compiler_params=pltpu.CompilerParams(
            dimension_semantics=("parallel", "parallel", "arbitrary"),
            vmem_limit_bytes=vmem_limit_bytes,
        ),
        cost_estimate=pl.CostEstimate(
            flops=2 * B * nc_pad * nf_pad * 4,
            transcendentals=0,
            bytes_accessed=B * nc_pad * 16 + face_bytes + B * nc_pad * 4,
        ),
    )(a1, r1)

    idx = out[:, :, :, 0].reshape(B, nc_pad)[:, :Nc]
    return jnp.clip(idx, 0, Nf - 1)


def collision_penalty_pallas(cloth_prev, cloth_pred, fc_prev, fc, normals, *, eps,
                             tile_nc=512, tile_nf=2048,
                             face_resident_bytes=8 * 1024 * 1024):
    """Per-example collision losses, shape (B,)."""
    f32 = jnp.float32
    idx = nearest_obstacle_face_pallas(
        cloth_prev, fc_prev, tile_nc=tile_nc, tile_nf=tile_nf,
        face_resident_bytes=face_resident_bytes)

    # O(Nc) epilogue in plain JAX (also keeps the loss differentiable wrt pred_pos)
    gather_b = jax.vmap(lambda arr, ind: arr[ind])
    nn_pts = gather_b(fc.astype(f32), idx)                       # (B, Nc, 3)
    nn_nrm = gather_b(normals.astype(f32), idx)                  # (B, Nc, 3)
    dist = jnp.sum((cloth_pred.astype(f32) - nn_pts) * nn_nrm, axis=-1)
    pen = jnp.maximum(eps - dist, 0.0) ** 3
    return pen.sum(axis=-1)


# ------------------------------ JAX glue ------------------------------------ #
def _face_geometry(obstacle_pos, obstacle_prev_pos, faces):
    """gather(pos, faces).mean(-2) face centres + FaceNormals (normalized)."""
    tri = obstacle_pos[faces]            # (Nf, 3, 3)
    tri_prev = obstacle_prev_pos[faces]  # (Nf, 3, 3)
    face_pos = tri.mean(axis=-2)
    face_prev_pos = tri_prev.mean(axis=-2)
    v0, v1, v2 = tri[:, 0], tri[:, 1], tri[:, 2]
    n = jnp.cross(v0 - v1, v2 - v1)
    n = n / jnp.maximum(jnp.linalg.norm(n, axis=-1, keepdims=True), 1e-12)
    return face_prev_pos, face_pos, n


class Criterion:
    """Collision penalty with ramped-up weight (HOOD)."""

    def __init__(self, weight_start, weight_max, start_rampup_iteration,
                 n_rampup_iterations, eps=0.001):
        self.weight_start = weight_start
        self.weight_max = weight_max
        self.start_rampup_iteration = start_rampup_iteration
        self.n_rampup_iterations = n_rampup_iterations
        self.eps = eps
        self.name = "collision_penalty"

    def get_weight(self, it):
        it = max(it - self.start_rampup_iteration, 0)
        progress = min(it / self.n_rampup_iterations, 1.0)
        return self.weight_start + (self.weight_max - self.weight_start) * progress

    def forward(self, sample, *, tile_nc=512, tile_nf=2048,
                face_resident_bytes=8 * 1024 * 1024):
        B = sample["cloth_pos"].shape[0]
        iter_num = int(sample["iter"])
        weight = self.get_weight(iter_num)
        fc_prev, fc, normals = jax.vmap(_face_geometry)(
            sample["obstacle_pos"], sample["obstacle_prev_pos"], sample["obstacle_faces"]
        )
        per_example = collision_penalty_pallas(
            sample["cloth_pos"], sample["cloth_pred_pos"], fc_prev, fc, normals,
            eps=self.eps, tile_nc=tile_nc, tile_nf=tile_nf,
            face_resident_bytes=face_resident_bytes,
        )
        loss = per_example.sum() / B * weight
        return dict(loss=loss)

    __call__ = forward


# --------------------------- reference (pure JAX) ---------------------------- #
def _ref_example_loss(prev, pred, fcp, fc, nrm, eps):
    d2 = jnp.sum((prev[:, None, :] - fcp[None, :, :]) ** 2, axis=-1)
    idx = jnp.argmin(d2, axis=-1)
    dist = jnp.sum((pred - fc[idx]) * nrm[idx], axis=-1)
    pen = jnp.maximum(eps - dist, 0.0) ** 3
    return pen.sum()


if __name__ == "__main__":
    # small shapes that exercise tiling, padding AND duplicate faces
    # (Nf=176 faces drawn from only 64 vertices -> lots of exactly-tied distances).
    B, Nc, Nv, Nf = 2, 200, 64, 176
    key = jax.random.PRNGKey(0)
    k1, k2, k3, k4, k5 = jax.random.split(key, 5)

    cloth_pos = jax.random.normal(k1, (B, Nc, 3), jnp.float32)            # cloth.pos (prev)
    cloth_pred_pos = cloth_pos + 0.05 * jax.random.normal(k2, (B, Nc, 3), jnp.float32)
    obstacle_pos = jax.random.normal(k3, (B, Nv, 3), jnp.float32)
    obstacle_prev_pos = obstacle_pos + 0.05 * jax.random.normal(k4, (B, Nv, 3), jnp.float32)
    base = jax.random.randint(k5, (B, Nf), 0, Nv)
    obstacle_faces = jnp.stack([base, (base + 5) % Nv, (base + 11) % Nv], axis=-1)

    sample = dict(
        cloth_pos=cloth_pos,
        cloth_pred_pos=cloth_pred_pos,
        obstacle_pos=obstacle_pos,
        obstacle_prev_pos=obstacle_prev_pos,
        obstacle_faces=obstacle_faces,
        iter=600,  # cloth.iter[0]
    )

    criterion = Criterion(weight_start=0.1, weight_max=1.0,
                          start_rampup_iteration=100, n_rampup_iterations=1000,
                          eps=1e-3)

    # pure-JAX reference
    fc_prev, fc, normals = jax.vmap(_face_geometry)(obstacle_pos, obstacle_prev_pos, obstacle_faces)
    ref = sum(
        _ref_example_loss(cloth_pos[i], cloth_pred_pos[i], fc_prev[i], fc[i], normals[i], 1e-3)
        for i in range(B)
    ) / B * criterion.get_weight(600)

    # 1) default config: big tiles, VMEM-resident face operand
    out = criterion(sample)
    loss = jax.block_until_ready(out["loss"])
    assert jnp.allclose(loss, ref, rtol=1e-4, atol=1e-6), (loss, ref)

    # 2) forced streaming + multi-tile on both axes (exercises online-min carry & padding)
    out2 = criterion(sample, tile_nc=64, tile_nf=128, face_resident_bytes=0)
    loss2 = jax.block_until_ready(out2["loss"])
    assert jnp.allclose(loss2, ref, rtol=1e-4, atol=1e-6), (loss2, ref)

    # 3) resident face slab with in-kernel face-chunk slicing (n_ft > 1 while resident)
    out3 = criterion(sample, tile_nc=64, tile_nf=128)
    loss3 = jax.block_until_ready(out3["loss"])
    assert jnp.allclose(loss3, ref, rtol=1e-4, atol=1e-6), (loss3, ref)

    print("KERNEL_OK")
</pallas_src>

<mosaic_0001>
module attributes {stable_mosaic.version = 11 : i64} {
  func.func @_nearest_face_kernel(%arg0: i32, %arg1: i32, %arg2: i32, %arg3: memref<1x200x4xf32, #tpu.memory_space<vmem>>, %arg4: memref<1x4x256xf32, #tpu.memory_space<vmem>>, %arg5: memref<1x1x200x1xi32, #tpu.memory_space<vmem>>, %arg6: memref<200x1xf32, #tpu.memory_space<vmem>>, %arg7: memref<200x1xf32, #tpu.memory_space<vmem>>) attributes {dimension_semantics = [#tpu.dimension_semantics<parallel>, #tpu.dimension_semantics<parallel>, #tpu.dimension_semantics<arbitrary>], iteration_bounds = array<i64: 2, 1, 1>, scalar_prefetch = 0 : i64, scratch_operands = 2 : i64, tpu.core_type = #tpu.core_type<tc>, window_params = [{transform_indices = @transform_0, window_bounds = array<i64: 1, 200, 4>}, {transform_indices = @transform_1, window_bounds = array<i64: 1, 4, 256>}, {transform_indices = @transform_2, window_bounds = array<i64: 1, 1, 200, 1>}]} {
    %c0_i32 = arith.constant 0 : i32
    %0 = arith.cmpi eq, %arg2, %c0_i32 : i32
    %1 = arith.extui %0 : i1 to i32
    %c0_i32_0 = arith.constant 0 : i32
    %2 = arith.cmpi ne, %1, %c0_i32_0 : i32
    scf.if %2 {
      %cst_21 = arith.constant 0x7F800000 : f32
      %35 = vector.broadcast %cst_21 : f32 to vector<200x1xf32>
      %c0_22 = arith.constant 0 : index
      %c0_23 = arith.constant 0 : index
      %36 = vector.load %arg6[%c0_22, %c0_23] : memref<200x1xf32, #tpu.memory_space<vmem>>, vector<200x1xf32>
      tpu.vector_store %arg6[%c0_22, %c0_23], %35 {strides = array<i32>} : memref<200x1xf32, #tpu.memory_space<vmem>>, vector<200x1xf32>,
      %cst_24 = arith.constant 0.000000e+00 : f32
      %37 = vector.broadcast %cst_24 : f32 to vector<200x1xf32>
      %c0_25 = arith.constant 0 : index
      %c0_26 = arith.constant 0 : index
      %38 = vector.load %arg7[%c0_25, %c0_26] : memref<200x1xf32, #tpu.memory_space<vmem>>, vector<200x1xf32>
      tpu.vector_store %arg7[%c0_25, %c0_26], %37 {strides = array<i32>} : memref<200x1xf32, #tpu.memory_space<vmem>>, vector<200x1xf32>,
    } else {
    }
    %c0 = arith.constant 0 : index
    %c0_1 = arith.constant 0 : index
    %c0_2 = arith.constant 0 : index
    %3 = vector.load %arg3[%c0, %c0_1, %c0_2] : memref<1x200x4xf32, #tpu.memory_space<vmem>>, vector<1x200x4xf32>
    %4 = vector.shape_cast %3 : vector<1x200x4xf32> to vector<200x4xf32>
    %c0_3 = arith.constant 0 : index
    %c0_4 = arith.constant 0 : index
    %c0_5 = arith.constant 0 : index
    %5 = vector.load %arg4[%c0_3, %c0_4, %c0_5] : memref<1x4x256xf32, #tpu.memory_space<vmem>>, vector<1x4x256xf32>
    %6 = vector.shape_cast %5 : vector<1x4x256xf32> to vector<4x256xf32>
    %cst = arith.constant dense<0.000000e+00> : vector<200x256xf32>
    %7 = tpu.matmul %4, %6, %cst {dimension_numbers = #tpu.dot_dimension_numbers<[1], [0], [0], [1], [0, 0, 1, 1], [], []>} : vector<200x4xf32>, vector<4x256xf32>, vector<200x256xf32> -> vector<200x256xf32>
    %cst_6 = arith.constant dense<0x7F800000> : vector<200xf32>
    %8 = vector.multi_reduction <minimumf>, %7, %cst_6 [1] : vector<200x256xf32> to vector<200xf32>
    %9 = vector.shape_cast %8 : vector<200xf32> to vector<200x1xf32>
    %c256_i32 = arith.constant 256 : i32
    %10 = arith.muli %arg2, %c256_i32 : i32
    %11 = arith.sitofp %10 : i32 to f32
    %12 = tpu.iota {dimensions = array<i32: 1>} : vector<1x256xi32>
    %13 = arith.sitofp %12 : vector<1x256xi32> to vector<1x256xf32>
    %14 = vector.broadcast %11 : f32 to vector<1x256xf32>
    %15 = arith.addf %14, %13 : vector<1x256xf32>
    %16 = vector.broadcast %9 : vector<200x1xf32> to vector<200x256xf32>
    %17 = arith.cmpf ole, %7, %16 : vector<200x256xf32>
    %cst_7 = arith.constant 0x7F800000 : f32
    %18 = vector.shape_cast %15 : vector<1x256xf32> to vector<1x256xf32>
    %19 = vector.broadcast %18 : vector<1x256xf32> to vector<200x256xf32>
    %20 = vector.broadcast %cst_7 : f32 to vector<200x256xf32>
    %21 = arith.select %17, %19, %20 : vector<200x256xi1>, vector<200x256xf32>
    %cst_8 = arith.constant dense<0x7F800000> : vector<200xf32>
    %22 = vector.multi_reduction <minimumf>, %21, %cst_8 [1] : vector<200x256xf32> to vector<200xf32>
    %23 = vector.shape_cast %22 : vector<200xf32> to vector<200x1xf32>
    %c0_9 = arith.constant 0 : index
    %c0_10 = arith.constant 0 : index
    %24 = vector.load %arg6[%c0_9, %c0_10] : memref<200x1xf32, #tpu.memory_space<vmem>>, vector<200x1xf32>
    %25 = arith.cmpf olt, %9, %24 : vector<200x1xf32>
    %c0_11 = arith.constant 0 : index
    %c0_12 = arith.constant 0 : index
    %26 = vector.load %arg7[%c0_11, %c0_12] : memref<200x1xf32, #tpu.memory_space<vmem>>, vector<200x1xf32>
    %27 = arith.select %25, %23, %26 : vector<200x1xi1>, vector<200x1xf32>
    %c0_13 = arith.constant 0 : index
    %c0_14 = arith.constant 0 : index
    %28 = vector.load %arg7[%c0_13, %c0_14] : memref<200x1xf32, #tpu.memory_space<vmem>>, vector<200x1xf32>
    tpu.vector_store %arg7[%c0_13, %c0_14], %27 {strides = array<i32>} : memref<200x1xf32, #tpu.memory_space<vmem>>, vector<200x1xf32>,
    %c0_15 = arith.constant 0 : index
    %c0_16 = arith.constant 0 : index
    %29 = vector.load %arg6[%c0_15, %c0_16] : memref<200x1xf32, #tpu.memory_space<vmem>>, vector<200x1xf32>
    %30 = arith.select %25, %9, %29 : vector<200x1xi1>, vector<200x1xf32>
    %c0_17 = arith.constant 0 : index
    %c0_18 = arith.constant 0 : index
    %31 = vector.load %arg6[%c0_17, %c0_18] : memref<200x1xf32, #tpu.memory_space<vmem>>, vector<200x1xf32>
    tpu.vector_store %arg6[%c0_17, %c0_18], %30 {strides = array<i32>} : memref<200x1xf32, #tpu.memory_space<vmem>>, vector<200x1xf32>,
    %c0_i32_19 = arith.constant 0 : i32
    %32 = arith.cmpi eq, %arg2, %c0_i32_19 : i32
    %33 = arith.extui %32 : i1 to i32
    %c0_i32_20 = arith.constant 0 : i32
    %34 = arith.cmpi ne, %33, %c0_i32_20 : i32
    scf.if %34 {
      %c0_21 = arith.constant 0 : index
      %c0_22 = arith.constant 0 : index
      %35 = vector.load %arg7[%c0_21, %c0_22] : memref<200x1xf32, #tpu.memory_space<vmem>>, vector<200x1xf32>
      %36 = arith.fptosi %35 : vector<200x1xf32> to vector<200x1xi32>
      %c0_23 = arith.constant 0 : index
      %c0_24 = arith.constant 0 : index
      %c0_25 = arith.constant 0 : index
      %c0_26 = arith.constant 0 : index
      %37 = vector.load %arg5[%c0_23, %c0_24, %c0_25, %c0_26] : memref<1x1x200x1xi32, #tpu.memory_space<vmem>>, vector<1x1x200x1xi32>
      %38 = vector.shape_cast %37 : vector<1x1x200x1xi32> to vector<200x1xi32>
      %39 = vector.shape_cast %36 : vector<200x1xi32> to vector<1x1x200x1xi32>
      tpu.vector_store %arg5[%c0_23, %c0_24, %c0_25, %c0_26], %39 {strides = array<i32>} : memref<1x1x200x1xi32, #tpu.memory_space<vmem>>, vector<1x1x200x1xi32>,
    } else {
    }
    return
  }
  func.func @transform_0(%arg0: i32, %arg1: i32, %arg2: i32) -> (i32, i32, i32) {
    %c0_i32 = arith.constant 0 : i32
    %c0_i32_0 = arith.constant 0 : i32
    return %arg0, %arg1, %c0_i32 : i32, i32, i32
  }
  func.func @transform_1(%arg0: i32, %arg1: i32, %arg2: i32) -> (i32, i32, i32) {
    %c0_i32 = arith.constant 0 : i32
    %c0_i32_0 = arith.constant 0 : i32
    %c0_i32_1 = arith.constant 0 : i32
    return %arg0, %c0_i32, %c0_i32_0 : i32, i32, i32
  }
  func.func @transform_2(%arg0: i32, %arg1: i32, %arg2: i32) -> (i32, i32, i32, i32) {
    %c0_i32 = arith.constant 0 : i32
    %c0_i32_0 = arith.constant 0 : i32
    %c0_i32_1 = arith.constant 0 : i32
    return %arg0, %arg1, %c0_i32, %c0_i32_0 : i32, i32, i32, i32
  }
}

</mosaic_0001>

<llo_original>
// kernel: tpu_custom_call.1
$region0: #{tpu_custom_call.1}
  #allocation0 [shape = 'u32[]', space=smem, size = 0x4, offset = 0x4, fixed_abs, tag = 'smem constant byte address 0x4 - core index']
  #allocation1 [shape = 'u32[144,128]{1,0:T(1,128)}', space=vmem, size = 0x12000, scoped, tag = 'internal scratch']
  #allocation2 [shape = 'f32[200,1]{1,0:T(8,128)}', space=vmem, size = 0x19000, scoped, tag = 'scratch operand']
  #allocation3 [shape = 'f32[200,1]{1,0:T(8,128)}', space=vmem, size = 0x19000, scoped, tag = 'scratch operand']
  %s0 = inlined_call_operand.vmem [shape: f32[2,200,4], index: 0, kind: input, shape index: {}]
  %s1 = inlined_call_operand.vmem [shape: f32[2,4,256], index: 1, kind: input, shape index: {}]
  %s2 = inlined_call_operand.vmem [shape: s32[2,1,200,1], index: 2, kind: output, shape index: {}]
  %s3 = sld [smem:[#allocation0]]
  $region49: #{tpu_custom_call.1} parent=0
    _
  %s5 = ssub.s32 1, %s3
  %s6 = scalar_select 0, %s5, %s3
  loop: start=0, step=1, limit=4
  $region2: #{tpu_custom_call.1} parent=0 // loop_pre_header
    _
  $region3: #{tpu_custom_call.1} parent=0 // loop_header
    %s8 = sphi 0, %s12
    %p9 = scmp.ge.s32.totalorder %s8, 4
    %s15 = sphi 0, %s34
    %s16 = sphi 0, %s30
    %s17 = sphi 0, %s26
    %s18 = sphi 0, %s15
    %s19 = sphi 0, %s16
    %s20 = sphi 0, %s17
    %s21 = sphi 0, %s18
    %s22 = sphi 0, %s19
    %s23 = sphi 0, %s20
    %s39 = sphi 0, %s41
    %s42 = sphi 0, %s39
    %s43 = sphi 0, %s42
    %s59 = sphi 0, %s43
    %s65 = sphi 0, %s67
    %s68 = sphi 0, %s65
    %s69 = sphi 0, %s68
    %s85 = sphi 0, %s69
    %s93 = sphi 0, %s95
    %s96 = sphi 0, %s93
    %s97 = sphi 0, %s96
    %s113 = sphi 0, %s97
  $region4: #{tpu_custom_call.1} parent=0 // loop_header_branch
    %11 = sbr.rel (%p9) target = $region8
  $region5: #{tpu_custom_call.1} parent=0 // loop_body
    %s13 = ssub.s32 %s8, 1
    %s14 = ssub.s32 %s8, 2
    %s24 = sadd.s32 1, %s17
    %p25 = scmp.ge.s32.totalorder %s24, 1
    %s26 = scalar_select %p25, 0, %s24
    %s27 = sadd.s32 1, %s16
    %s28 = scalar_select %p25, %s27, %s16
    %p29 = scmp.ge.s32.totalorder %s28, 1
    %s30 = scalar_select %p29, 0, %s28
    %s31 = sadd.s32 1, %s15
    %s32 = scalar_select %p29, %s31, %s15
    %p33 = scmp.ge.s32.totalorder %s32, 2
    %s34 = scalar_select %p33, 0, %s32
    %s35 = ssub.s32 %s15, %s34
    %s36 = ssub.s32 %s16, %s30
    %s37 = sor.u32 %s35, %s36
    %p38 = scmp.eq.s32.totalorder %s37, 0
    %s40 = sadd.s32 %s39, 1
    %s41 = scalar_select %p38, %s39, %s40
    %p44 = pneg %p38
    %p45 = scmp.eq.s32.totalorder %s8, 1
    %p46 = por %p44, %p45
    %p47 = scmp.ne.s32.totalorder %s39, %s42
    %p48 = scmp.eq.s32.totalorder %s8, 0
    %p49 = por %p47, %p48
    %p50 = scmp.ne.s32.totalorder %s39, %s42
    %p51 = scmp.eq.s32.totalorder %s13, 1
    %p52 = por %p50, %p51
    %p53 = scmp.ne.s32.totalorder %s42, %s43
    %p54 = scmp.eq.s32.totalorder %s13, 0
    %p55 = por %p53, %p54
    %p56 = scmp.ne.s32.totalorder %s42, %s43
    %p57 = scmp.eq.s32.totalorder %s14, 1
    %p58 = por %p56, %p57
    %p60 = scmp.ne.s32.totalorder %s43, %s59
    %p61 = scmp.eq.s32.totalorder %s14, 0
    %p62 = por %p60, %p61
    %s63 = ssub.s32 %s15, %s34
    %p64 = scmp.eq.s32.totalorder %s63, 0
    %s66 = sadd.s32 %s65, 1
    %s67 = scalar_select %p64, %s65, %s66
    %p70 = pneg %p64
    %p71 = scmp.eq.s32.totalorder %s8, 1
    %p72 = por %p70, %p71
    %p73 = scmp.ne.s32.totalorder %s65, %s68
    %p74 = scmp.eq.s32.totalorder %s8, 0
    %p75 = por %p73, %p74
    %p76 = scmp.ne.s32.totalorder %s65, %s68
    %p77 = scmp.eq.s32.totalorder %s13, 1
    %p78 = por %p76, %p77
    %p79 = scmp.ne.s32.totalorder %s68, %s69
    %p80 = scmp.eq.s32.totalorder %s13, 0
    %p81 = por %p79, %p80
    %p82 = scmp.ne.s32.totalorder %s68, %s69
    %p83 = scmp.eq.s32.totalorder %s14, 1
    %p84 = por %p82, %p83
    %p86 = scmp.ne.s32.totalorder %s69, %s85
    %p87 = scmp.eq.s32.totalorder %s14, 0
    %p88 = por %p86, %p87
    %s89 = ssub.s32 %s15, %s34
    %s90 = ssub.s32 %s16, %s30
    %s91 = sor.u32 %s89, %s90
    %p92 = scmp.eq.s32.totalorder %s91, 0
    %s94 = sadd.s32 %s93, 1
    %s95 = scalar_select %p92, %s93, %s94
    %p98 = pneg %p92
    %p99 = scmp.eq.s32.totalorder %s8, 1
    %p100 = por %p98, %p99
    %p101 = scmp.ne.s32.totalorder %s93, %s96
    %p102 = scmp.eq.s32.totalorder %s8, 0
    %p103 = por %p101, %p102
    %p104 = scmp.ne.s32.totalorder %s93, %s96
    %p105 = scmp.eq.s32.totalorder %s13, 1
    %p106 = por %p104, %p105
    %p107 = scmp.ne.s32.totalorder %s96, %s97
    %p108 = scmp.eq.s32.totalorder %s13, 0
    %p109 = por %p107, %p108
    %p110 = scmp.ne.s32.totalorder %s96, %s97
    %p111 = scmp.eq.s32.totalorder %s14, 1
    %p112 = por %p110, %p111
    %p114 = scmp.ne.s32.totalorder %s97, %s113
    %p115 = scmp.eq.s32.totalorder %s14, 0
    %p116 = por %p114, %p115
    %p117 = scmp.le.s32.totalorder 1, %s8
    %p118 = scmp.lt.s32.totalorder %s8, 3
    %p119 = pnand %p117, %p118
    %p120 = pneg %p119
    // Predicated region
    $region9: #{tpu_custom_call.1} parent=5 // pred_check
      _
    $region10: #{tpu_custom_call.1} parent=5 // pred_check_branch
      %122 = sbr.rel (%p119) target = $region12
    $region11: #{tpu_custom_call.1} parent=5 // pred_region
      %s123 = ssub.s32 %s8, 1
    $region12: #{tpu_custom_call.1} parent=5 // pred_fallthru
      _
    %p124 = scmp.lt.s32.totalorder %s8, 2
    // Predicated region
    $region13: #{tpu_custom_call.1} parent=5 // pred_check
      %p125 = pneg %p124
    $region14: #{tpu_custom_call.1} parent=5 // pred_check_branch
      %127 = sbr.rel (%p125) target = $region16
    $region15: #{tpu_custom_call.1} parent=5 // pred_region
      // Predicated region
      $region17: #{tpu_custom_call.1} parent=15 // pred_check
        %p128 = pneg %p49
      $region18: #{tpu_custom_call.1} parent=15 // pred_check_branch
        %130 = sbr.rel (%p128) target = $region20
      $region19: #{tpu_custom_call.1} parent=15 // pred_region
        %s131 = smul.u32 25, %s16
        %p132 = scmp.lt.s32.totalorder %s15, 1
        %s133 = scalar_select %p132, %s15, 1
        %p134 = scmp.lt.s32.totalorder %s131, 24
        %s135 = scalar_select %p134, %s131, 24
        %s136 = smul.addr %s133, 25
        %s137 = sadd.s32 %s135, %s136
        %s138 = smul.addr %s137, 8
        %s139 = scalar_lea.vmem %s0, %s138
        %s140 = smul.u32 25, %s16
      $region20: #{tpu_custom_call.1} parent=15 // pred_fallthru
        _
      // Predicated region
      $region21: #{tpu_custom_call.1} parent=15 // pred_check
        %p141 = pneg %p75
      $region22: #{tpu_custom_call.1} parent=15 // pred_check_branch
        %143 = sbr.rel (%p141) target = $region24
      $region23: #{tpu_custom_call.1} parent=15 // pred_region
        %p144 = scmp.lt.s32.totalorder %s15, 1
        %s145 = scalar_select %p144, %s15, 1
        %s146 = smul.addr %s145, 2
        %s147 = smul.addr %s146, 4
        %s148 = scalar_lea.vmem %s1, %s147
      $region24: #{tpu_custom_call.1} parent=15 // pred_fallthru
        _
    $region16: #{tpu_custom_call.1} parent=5 // pred_fallthru
      _
    %p149 = scmp.le.s32.totalorder 1, %s8
    %p150 = scmp.lt.s32.totalorder %s8, 3
    %p151 = pnand %p149, %p150
    %p152 = pneg %p151
    // Predicated region
    $region25: #{tpu_custom_call.1} parent=5 // pred_check
      _
    $region26: #{tpu_custom_call.1} parent=5 // pred_check_branch
      %154 = sbr.rel (%p151) target = $region28
    $region27: #{tpu_custom_call.1} parent=5 // pred_region
      %s155 = ssub.s32 %s8, 1
      %s156 = smul.u32 25, %s19
      %p157 = scmp.lt.s32.totalorder %s18, 1
      %s158 = scalar_select %p157, %s18, 1
      %p159 = scmp.lt.s32.totalorder %s156, 24
      %s160 = scalar_select %p159, %s156, 24
      %s161 = smul.addr %s158, 25
      %s162 = sadd.s32 %s160, %s161
      %s163 = smul.addr %s162, 8
      %s164 = scalar_lea.vmem %s0, %s163
      %p165 = pneg %p55
      %p166 = pneg %p52
      %p167 = scmp.lt.s32.totalorder %s18, 1
      %s168 = scalar_select %p167, %s18, 1
      %s169 = smul.addr %s168, 2
      %s170 = smul.addr %s169, 4
      %s171 = scalar_lea.vmem %s1, %s170
      %p172 = pneg %p81
      %p173 = pneg %p78
      %p174 = pneg %p109
      %p175 = pneg %p106
      %p176 = scmp.lt.s32.totalorder %s18, 1
      %s177 = scalar_select %p176, %s18, 1
      %p178 = scmp.lt.s32.totalorder %s19, 0
      %s179 = scalar_select %p178, %s19, 0
      %s180 = smul.addr %s179, 25
      %s181 = smul.addr %s177, 25
      %s182 = sadd.s32 %s180, %s181
      %s183 = smul.addr %s182, 8
      %s184 = scalar_lea.vmem %s2, %s183
      %s185 = smul.u32 25, %s19
      %p186 = scmp.lt.s32.totalorder %s18, 1
      %s187 = scalar_select %p186, %s18, 1
      %p188 = scmp.lt.s32.totalorder %s185, 24
      %s189 = scalar_select %p188, %s185, 24
      %s190 = smul.addr %s187, 25
      %s191 = sadd.s32 %s189, %s190
      %s192 = smul.addr %s191, 8
      %s193 = scalar_lea.vmem %s0, %s192
      %s194 = smul.u32 25, %s19
      %p195 = scmp.lt.s32.totalorder %s18, 1
      %s196 = scalar_select %p195, %s18, 1
      %s197 = smul.addr %s196, 2
      %s198 = smul.addr %s197, 4
      %s199 = scalar_lea.vmem %s1, %s198
      %p200 = scmp.lt.s32.totalorder %s18, 1
      %s201 = scalar_select %p200, %s18, 1
      %p202 = scmp.lt.s32.totalorder %s19, 0
      %s203 = scalar_select %p202, %s19, 0
      %s204 = smul.addr %s203, 25
      %s205 = smul.addr %s201, 25
      %s206 = sadd.s32 %s204, %s205
      %s207 = smul.addr %s206, 8
      %s208 = scalar_lea.vmem %s2, %s207
      %p209 = scmp.eq.s32.totalorder %s20, 0
      // Predicated region
      $region29: #{tpu_custom_call.1} parent=27 // pred_check
        %p210 = pneg %p209
      $region30: #{tpu_custom_call.1} parent=27 // pred_check_branch
        %212 = sbr.rel (%p210) target = $region32
      $region31: #{tpu_custom_call.1} parent=27 // pred_region
        %vm213 = vcmask 7168
        %214 = vst.msk [vmem:[#allocation2] sm:$0xff] %vm213, inf
        %215 = vst.msk [vmem:[#allocation2 + $0x8] sm:$0xff] %vm213, inf
        %216 = vst.msk [vmem:[#allocation2 + $0x10] sm:$0xff] %vm213, inf
        %217 = vst.msk [vmem:[#allocation2 + $0x18] sm:$0xff] %vm213, inf
        %218 = vst.msk [vmem:[#allocation2 + $0x20] sm:$0xff] %vm213, inf
        %219 = vst.msk [vmem:[#allocation2 + $0x28] sm:$0xff] %vm213, inf
        %220 = vst.msk [vmem:[#allocation2 + $0x30] sm:$0xff] %vm213, inf
        %221 = vst.msk [vmem:[#allocation2 + $0x38] sm:$0xff] %vm213, inf
        %222 = vst.msk [vmem:[#allocation2 + $0x40] sm:$0xff] %vm213, inf
        %223 = vst.msk [vmem:[#allocation2 + $0x48] sm:$0xff] %vm213, inf
        %224 = vst.msk [vmem:[#allocation2 + $0x50] sm:$0xff] %vm213, inf
        %225 = vst.msk [vmem:[#allocation2 + $0x58] sm:$0xff] %vm213, inf
        %226 = vst.msk [vmem:[#allocation2 + $0x60] sm:$0xff] %vm213, inf
        %227 = vst.msk [vmem:[#allocation2 + $0x68] sm:$0xff] %vm213, inf
        %228 = vst.msk [vmem:[#allocation2 + $0x70] sm:$0xff] %vm213, inf
        %229 = vst.msk [vmem:[#allocation2 + $0x78] sm:$0xff] %vm213, inf
        %230 = vst.msk [vmem:[#allocation2 + $0x80] sm:$0xff] %vm213, inf
        %231 = vst.msk [vmem:[#allocation2 + $0x88] sm:$0xff] %vm213, inf
        %232 = vst.msk [vmem:[#allocation2 + $0x90] sm:$0xff] %vm213, inf
        %233 = vst.msk [vmem:[#allocation2 + $0x98] sm:$0xff] %vm213, inf
        %234 = vst.msk [vmem:[#allocation2 + $0xa0] sm:$0xff] %vm213, inf
        %235 = vst.msk [vmem:[#allocation2 + $0xa8] sm:$0xff] %vm213, inf
        %236 = vst.msk [vmem:[#allocation2 + $0xb0] sm:$0xff] %vm213, inf
        %237 = vst.msk [vmem:[#allocation2 + $0xb8] sm:$0xff] %vm213, inf
        %238 = vst.msk [vmem:[#allocation2 + $0xc0] sm:$0xff] %vm213, inf
        %239 = vst.msk [vmem:[#allocation3] sm:$0xff] %vm213, 0.0
        %240 = vst.msk [vmem:[#allocation3 + $0x8] sm:$0xff] %vm213, 0.0
        %241 = vst.msk [vmem:[#allocation3 + $0x10] sm:$0xff] %vm213, 0.0
        %242 = vst.msk [vmem:[#allocation3 + $0x18] sm:$0xff] %vm213, 0.0
        %243 = vst.msk [vmem:[#allocation3 + $0x20] sm:$0xff] %vm213, 0.0
        %244 = vst.msk [vmem:[#allocation3 + $0x28] sm:$0xff] %vm213, 0.0
        %245 = vst.msk [vmem:[#allocation3 + $0x30] sm:$0xff] %vm213, 0.0
        %246 = vst.msk [vmem:[#allocation3 + $0x38] sm:$0xff] %vm213, 0.0
        %247 = vst.msk [vmem:[#allocation3 + $0x40] sm:$0xff] %vm213, 0.0
        %248 = vst.msk [vmem:[#allocation3 + $0x48] sm:$0xff] %vm213, 0.0
        %249 = vst.msk [vmem:[#allocation3 + $0x50] sm:$0xff] %vm213, 0.0
        %250 = vst.msk [vmem:[#allocation3 + $0x58] sm:$0xff] %vm213, 0.0
        %251 = vst.msk [vmem:[#allocation3 + $0x60] sm:$0xff] %vm213, 0.0
        %252 = vst.msk [vmem:[#allocation3 + $0x68] sm:$0xff] %vm213, 0.0
        %253 = vst.msk [vmem:[#allocation3 + $0x70] sm:$0xff] %vm213, 0.0
        %254 = vst.msk [vmem:[#allocation3 + $0x78] sm:$0xff] %vm213, 0.0
        %255 = vst.msk [vmem:[#allocation3 + $0x80] sm:$0xff] %vm213, 0.0
        %256 = vst.msk [vmem:[#allocation3 + $0x88] sm:$0xff] %vm213, 0.0
        %257 = vst.msk [vmem:[#allocation3 + $0x90] sm:$0xff] %vm213, 0.0
        %258 = vst.msk [vmem:[#allocation3 + $0x98] sm:$0xff] %vm213, 0.0
        %259 = vst.msk [vmem:[#allocation3 + $0xa0] sm:$0xff] %vm213, 0.0
        %260 = vst.msk [vmem:[#allocation3 + $0xa8] sm:$0xff] %vm213, 0.0
        %261 = vst.msk [vmem:[#allocation3 + $0xb0] sm:$0xff] %vm213, 0.0
        %262 = vst.msk [vmem:[#allocation3 + $0xb8] sm:$0xff] %vm213, 0.0
        %263 = vst.msk [vmem:[#allocation3 + $0xc0] sm:$0xff] %vm213, 0.0
      $region32: #{tpu_custom_call.1} parent=27 // pred_fallthru
        _
      %v264 = vld [vmem:[%s193] sm:$0xff]
      %v265 = vld [vmem:[%s193 + $0x8] sm:$0xff]
      %v266 = vld [vmem:[%s193 + $0x10] sm:$0xff]
      %v267 = vld [vmem:[%s193 + $0x18] sm:$0xff]
      %v268 = vld [vmem:[%s193 + $0x20] sm:$0xff]
      %v269 = vld [vmem:[%s193 + $0x28] sm:$0xff]
      %v270 = vld [vmem:[%s193 + $0x30] sm:$0xff]
      %v271 = vld [vmem:[%s193 + $0x38] sm:$0xff]
      %v272 = vld [vmem:[%s193 + $0x40] sm:$0xff]
      %v273 = vld [vmem:[%s193 + $0x48] sm:$0xff]
      %v274 = vld [vmem:[%s193 + $0x50] sm:$0xff]
      %v275 = vld [vmem:[%s193 + $0x58] sm:$0xff]
      %v276 = vld [vmem:[%s193 + $0x60] sm:$0xff]
      %v277 = vld [vmem:[%s193 + $0x68] sm:$0xff]
      %v278 = vld [vmem:[%s193 + $0x70] sm:$0xff]
      %v279 = vld [vmem:[%s193 + $0x78] sm:$0xff]
      %v280 = vld [vmem:[%s193 + $0x80] sm:$0xff]
      %v281 = vld [vmem:[%s193 + $0x88] sm:$0xff]
      %v282 = vld [vmem:[%s193 + $0x90] sm:$0xff]
      %v283 = vld [vmem:[%s193 + $0x98] sm:$0xff]
      %v284 = vld [vmem:[%s193 + $0xa0] sm:$0xff]
      %v285 = vld [vmem:[%s193 + $0xa8] sm:$0xff]
      %v286 = vld [vmem:[%s193 + $0xb0] sm:$0xff]
      %v287 = vld [vmem:[%s193 + $0xb8] sm:$0xff]
      %v288 = vld [vmem:[%s193 + $0xc0] sm:$0xff]
      %v289 = vld [vmem:[%s199] sm:$0xff]
      %v291 = vcombine.high %v289, %v289
      %vm292 = vcmask 31744
      %v294 = vsel %vm292, %v264, 0
      %v297 = vsel %vm292, %v265, 0
      %v300 = vsel %vm292, %v266, 0
      %v303 = vsel %vm292, %v267, 0
      %v306 = vsel %vm292, %v268, 0
      %v309 = vsel %vm292, %v269, 0
      %v312 = vsel %vm292, %v270, 0
      %v315 = vsel %vm292, %v271, 0
      %v318 = vsel %vm292, %v272, 0
      %v321 = vsel %vm292, %v273, 0
      %v324 = vsel %vm292, %v274, 0
      %v327 = vsel %vm292, %v275, 0
      %v330 = vsel %vm292, %v276, 0
      %v333 = vsel %vm292, %v277, 0
      %v336 = vsel %vm292, %v278, 0
      %v339 = vsel %vm292, %v279, 0
      %v342 = vsel %vm292, %v280, 0
      %v345 = vsel %vm292, %v281, 0
      %v348 = vsel %vm292, %v282, 0
      %v351 = vsel %vm292, %v283, 0
      %v354 = vsel %vm292, %v284, 0
      %v357 = vsel %vm292, %v285, 0
      %v360 = vsel %vm292, %v286, 0
      %v363 = vsel %vm292, %v287, 0
      %v366 = vsel %vm292, %v288, 0
      %vm368 = vcmask 1043456
      %v369 = vsel %vm368, %v289, 0
      %v371 = vsel %vm368, %v291, 0
      %373 = vmatprep.subr.mxu0 %v371
      %374 = vmatpush1.msra.mxu0 %v369
      %375 = vmatprep.subr.mxu0 0.0
      %376 = vmatpush1.msra.mxu0 0.0
      %377 = vmatprep.subr.mxu0 0.0
      %378 = vmatpush1.msra.mxu0 0.0
      %379 = vmatprep.subr.mxu0 0.0
      %380 = vmatpush1.msra.mxu0 0.0
      %381 = vmatprep.subr.mxu0 0.0
      %382 = vmatpush1.msra.mxu0 0.0
      %383 = vmatprep.subr.mxu0 0.0
      %384 = vmatpush1.msra.mxu0 0.0
      %385 = vmatprep.subr.mxu0 0.0
      %386 = vmatpush1.msra.mxu0 0.0
      %387 = vmatprep.subr.mxu0 0.0
      %388 = vmatpush1.msra.mxu0 0.0
      %389 = vmatprep.subr.mxu0 0.0
      %390 = vmatpush1.msra.mxu0 0.0
      %391 = vmatprep.subr.mxu0 0.0
      %392 = vmatpush1.msra.mxu0 0.0
      %393 = vmatprep.subr.mxu0 0.0
      %394 = vmatpush1.msra.mxu0 0.0
      %395 = vmatprep.subr.mxu0 0.0
      %396 = vmatpush1.msra.mxu0 0.0
      %397 = vmatprep.subr.mxu0 0.0
      %398 = vmatpush1.msra.mxu0 0.0
      %399 = vmatprep.subr.mxu0 0.0
      %400 = vmatpush1.msra.mxu0 0.0
      %401 = vmatprep.subr.mxu0 0.0
      %402 = vmatpush1.msra.mxu0 0.0
      %403 = vmatprep.subr.mxu0 0.0
      %404 = vmatpush1.msra.mxu0 0.0
      %405 = vmatprep.subr.mxu0 0.0
      %406 = vmatpush1.msra.mxu0 0.0
      %407 = vmatprep.subr.mxu0 0.0
      %408 = vmatpush1.msra.mxu0 0.0
      %409 = vmatprep.subr.mxu0 0.0
      %410 = vmatpush1.msra.mxu0 0.0
      %411 = vmatprep.subr.mxu0 0.0
      %412 = vmatpush1.msra.mxu0 0.0
      %413 = vmatprep.subr.mxu0 0.0
      %414 = vmatpush1.msra.mxu0 0.0
      %415 = vmatprep.subr.mxu0 0.0
      %416 = vmatpush1.msra.mxu0 0.0
      %417 = vmatprep.subr.mxu0 0.0
      %418 = vmatpush1.msra.mxu0 0.0
      %419 = vmatprep.subr.mxu0 0.0
      %420 = vmatpush1.msra.mxu0 0.0
      %421 = vmatprep.subr.mxu0 0.0
      %422 = vmatpush1.msra.mxu0 0.0
      %423 = vmatprep.subr.mxu0 0.0
      %424 = vmatpush1.msra.mxu0 0.0
      %425 = vmatprep.subr.mxu0 0.0
      %426 = vmatpush1.msra.mxu0 0.0
      %427 = vmatprep.subr.mxu0 0.0
      %428 = vmatpush1.msra.mxu0 0.0
      %429 = vmatprep.subr.mxu0 0.0
      %430 = vmatpush1.msra.mxu0 0.0
      %431 = vmatprep.subr.mxu0 0.0
      %432 = vmatpush1.msra.mxu0 0.0
      %433 = vmatprep.subr.mxu0 0.0
      %434 = vmatpush1.msra.mxu0 0.0
      %435 = vmatprep.subr.mxu0 0.0
      %436 = vmatpush1.msra.mxu0 0.0
      %437 = vmatprep.mubr.f32.mxu0 0.0
      %438 = vmatmul.mubr.f32.gmra.mrb[0].mxu0 %v294
      %v439 = vpop.f32.mrb[0].mxu0
      %v440 = vadd.f32 0.0, %v439
      %v441 = vpop.f32.mrb[0].mxu0
      %v442 = vadd.f32 0.0, %v441
      %443 = vmatprep.mubr.f32.mxu0 0.0
      %444 = vmatmul.mubr.f32.gmra.mrb[0].mxu0 %v297
      %v445 = vpop.f32.mrb[0].mxu0
      %v446 = vadd.f32 0.0, %v445
      %v447 = vpop.f32.mrb[0].mxu0
      %v448 = vadd.f32 0.0, %v447
      %449 = vmatprep.mubr.f32.mxu0 0.0
      %450 = vmatmul.mubr.f32.gmra.mrb[0].mxu0 %v300
      %v451 = vpop.f32.mrb[0].mxu0
      %v452 = vadd.f32 0.0, %v451
      %v453 = vpop.f32.mrb[0].mxu0
      %v454 = vadd.f32 0.0, %v453
      %455 = vmatprep.mubr.f32.mxu0 0.0
      %456 = vmatmul.mubr.f32.gmra.mrb[0].mxu0 %v303
      %v457 = vpop.f32.mrb[0].mxu0
      %v458 = vadd.f32 0.0, %v457
      %v459 = vpop.f32.mrb[0].mxu0
      %v460 = vadd.f32 0.0, %v459
      %461 = vmatprep.mubr.f32.mxu0 0.0
      %462 = vmatmul.mubr.f32.gmra.mrb[0].mxu0 %v306
      %v463 = vpop.f32.mrb[0].mxu0
      %v464 = vadd.f32 0.0, %v463
      %v465 = vpop.f32.mrb[0].mxu0
      %v466 = vadd.f32 0.0, %v465
      %467 = vmatprep.mubr.f32.mxu0 0.0
      %468 = vmatmul.mubr.f32.gmra.mrb[0].mxu0 %v309
      %v469 = vpop.f32.mrb[0].mxu0
      %v470 = vadd.f32 0.0, %v469
      %v471 = vpop.f32.mrb[0].mxu0
      %v472 = vadd.f32 0.0, %v471
      %473 = vmatprep.mubr.f32.mxu0 0.0
      %474 = vmatmul.mubr.f32.gmra.mrb[0].mxu0 %v312
      %v475 = vpop.f32.mrb[0].mxu0
      %v476 = vadd.f32 0.0, %v475
      %v477 = vpop.f32.mrb[0].mxu0
      %v478 = vadd.f32 0.0, %v477
      %479 = vmatprep.mubr.f32.mxu0 0.0
      %480 = vmatmul.mubr.f32.gmra.mrb[0].mxu0 %v315
      %v481 = vpop.f32.mrb[0].mxu0
      %v482 = vadd.f32 0.0, %v481
      %v483 = vpop.f32.mrb[0].mxu0
      %v484 = vadd.f32 0.0, %v483
      %485 = vmatprep.mubr.f32.mxu0 0.0
      %486 = vmatmul.mubr.f32.gmra.mrb[0].mxu0 %v318
      %v487 = vpop.f32.mrb[0].mxu0
      %v488 = vadd.f32 0.0, %v487
      %v489 = vpop.f32.mrb[0].mxu0
      %v490 = vadd.f32 0.0, %v489
      %491 = vmatprep.mubr.f32.mxu0 0.0
      %492 = vmatmul.mubr.f32.gmra.mrb[0].mxu0 %v321
      %v493 = vpop.f32.mrb[0].mxu0
      %v494 = vadd.f32 0.0, %v493
      %v495 = vpop.f32.mrb[0].mxu0
      %v496 = vadd.f32 0.0, %v495
      %497 = vmatprep.mubr.f32.mxu0 0.0
      %498 = vmatmul.mubr.f32.gmra.mrb[0].mxu0 %v324
      %v499 = vpop.f32.mrb[0].mxu0
      %v500 = vadd.f32 0.0, %v499
      %v501 = vpop.f32.mrb[0].mxu0
      %v502 = vadd.f32 0.0, %v501
      %503 = vmatprep.mubr.f32.mxu0 0.0
      %504 = vmatmul.mubr.f32.gmra.mrb[0].mxu0 %v327
      %v505 = vpop.f32.mrb[0].mxu0
      %v506 = vadd.f32 0.0, %v505
      %v507 = vpop.f32.mrb[0].mxu0
      %v508 = vadd.f32 0.0, %v507
      %509 = vmatprep.mubr.f32.mxu0 0.0
      %510 = vmatmul.mubr.f32.gmra.mrb[0].mxu0 %v330
      %v511 = vpop.f32.mrb[0].mxu0
      %v512 = vadd.f32 0.0, %v511
      %v513 = vpop.f32.mrb[0].mxu0
      %v514 = vadd.f32 0.0, %v513
      %515 = vmatprep.mubr.f32.mxu0 0.0
      %516 = vmatmul.mubr.f32.gmra.mrb[0].mxu0 %v333
      %v517 = vpop.f32.mrb[0].mxu0
      %v518 = vadd.f32 0.0, %v517
      %v519 = vpop.f32.mrb[0].mxu0
      %v520 = vadd.f32 0.0, %v519
      %521 = vmatprep.mubr.f32.mxu0 0.0
      %522 = vmatmul.mubr.f32.gmra.mrb[0].mxu0 %v336
      %v523 = vpop.f32.mrb[0].mxu0
      %v524 = vadd.f32 0.0, %v523
      %v525 = vpop.f32.mrb[0].mxu0
      %v526 = vadd.f32 0.0, %v525
      %527 = vmatprep.mubr.f32.mxu0 0.0
      %528 = vmatmul.mubr.f32.gmra.mrb[0].mxu0 %v339
      %v529 = vpop.f32.mrb[0].mxu0
      %v530 = vadd.f32 0.0, %v529
      %v531 = vpop.f32.mrb[0].mxu0
      %v532 = vadd.f32 0.0, %v531
      %533 = vmatprep.mubr.f32.mxu0 0.0
      %534 = vmatmul.mubr.f32.gmra.mrb[0].mxu0 %v342
      %v535 = vpop.f32.mrb[0].mxu0
      %v536 = vadd.f32 0.0, %v535
      %v537 = vpop.f32.mrb[0].mxu0
      %v538 = vadd.f32 0.0, %v537
      %539 = vmatprep.mubr.f32.mxu0 0.0
      %540 = vmatmul.mubr.f32.gmra.mrb[0].mxu0 %v345
      %v541 = vpop.f32.mrb[0].mxu0
      %v542 = vadd.f32 0.0, %v541
      %v543 = vpop.f32.mrb[0].mxu0
      %v544 = vadd.f32 0.0, %v543
      %545 = vmatprep.mubr.f32.mxu0 0.0
      %546 = vmatmul.mubr.f32.gmra.mrb[0].mxu0 %v348
      %v547 = vpop.f32.mrb[0].mxu0
      %v548 = vadd.f32 0.0, %v547
      %v549 = vpop.f32.mrb[0].mxu0
      %v550 = vadd.f32 0.0, %v549
      %551 = vmatprep.mubr.f32.mxu0 0.0
      %552 = vmatmul.mubr.f32.gmra.mrb[0].mxu0 %v351
      %v553 = vpop.f32.mrb[0].mxu0
      %v554 = vadd.f32 0.0, %v553
      %v555 = vpop.f32.mrb[0].mxu0
      %v556 = vadd.f32 0.0, %v555
      %557 = vmatprep.mubr.f32.mxu0 0.0
      %558 = vmatmul.mubr.f32.gmra.mrb[0].mxu0 %v354
      %v559 = vpop.f32.mrb[0].mxu0
      %v560 = vadd.f32 0.0, %v559
      %v561 = vpop.f32.mrb[0].mxu0
      %v562 = vadd.f32 0.0, %v561
      %563 = vmatprep.mubr.f32.mxu0 0.0
      %564 = vmatmul.mubr.f32.gmra.mrb[0].mxu0 %v357
      %v565 = vpop.f32.mrb[0].mxu0
      %v566 = vadd.f32 0.0, %v565
      %v567 = vpop.f32.mrb[0].mxu0
      %v568 = vadd.f32 0.0, %v567
      %569 = vmatprep.mubr.f32.mxu0 0.0
      %570 = vmatmul.mubr.f32.gmra.mrb[0].mxu0 %v360
      %v571 = vpop.f32.mrb[0].mxu0
      %v572 = vadd.f32 0.0, %v571
      %v573 = vpop.f32.mrb[0].mxu0
      %v574 = vadd.f32 0.0, %v573
      %575 = vmatprep.mubr.f32.mxu0 0.0
      %576 = vmatmul.mubr.f32.gmra.mrb[0].mxu0 %v363
      %v577 = vpop.f32.mrb[0].mxu0
      %v578 = vadd.f32 0.0, %v577
      %v579 = vpop.f32.mrb[0].mxu0
      %v580 = vadd.f32 0.0, %v579
      %581 = vmatprep.mubr.f32.mxu0 0.0
      %582 = vmatmul.mubr.f32.gmra.mrb[0].mxu0 %v366
      %v583 = vpop.f32.mrb[0].mxu0
      %v584 = vadd.f32 0.0, %v583
      %v585 = vpop.f32.mrb[0].mxu0
      %v586 = vadd.f32 0.0, %v585
      %587 = vdwg.mxu0
      %v588 = vmin.f32 %v440, %v442
      %589 = vmin.xlane.f32.xlu0 %v588
      %v590 = vpop.xlane.xlu0 %589
      %v591 = vmin.f32 %v446, %v448
      %592 = vmin.xlane.f32.xlu0 %v591
      %v593 = vpop.xlane.xlu0 %592
      %v594 = vmin.f32 %v452, %v454
      %595 = vmin.xlane.f32.xlu0 %v594
      %v596 = vpop.xlane.xlu0 %595
      %v597 = vmin.f32 %v458, %v460
      %598 = vmin.xlane.f32.xlu0 %v597
      %v599 = vpop.xlane.xlu0 %598
      %v600 = vmin.f32 %v464, %v466
      %601 = vmin.xlane.f32.xlu0 %v600
      %v602 = vpop.xlane.xlu0 %601
      %v603 = vmin.f32 %v470, %v472
      %604 = vmin.xlane.f32.xlu0 %v603
      %v605 = vpop.xlane.xlu0 %604
      %v606 = vmin.f32 %v476, %v478
      %607 = vmin.xlane.f32.xlu0 %v606
      %v608 = vpop.xlane.xlu0 %607
      %v609 = vmin.f32 %v482, %v484
      %610 = vmin.xlane.f32.xlu0 %v609
      %v611 = vpop.xlane.xlu0 %610
      %v612 = vmin.f32 %v488, %v490
      %613 = vmin.xlane.f32.xlu0 %v612
      %v614 = vpop.xlane.xlu0 %613
      %v615 = vmin.f32 %v494, %v496
      %616 = vmin.xlane.f32.xlu0 %v615
      %v617 = vpop.xlane.xlu0 %616
      %v618 = vmin.f32 %v500, %v502
      %619 = vmin.xlane.f32.xlu0 %v618
      %v620 = vpop.xlane.xlu0 %619
      %v621 = vmin.f32 %v506, %v508
      %622 = vmin.xlane.f32.xlu0 %v621
      %v623 = vpop.xlane.xlu0 %622
      %v624 = vmin.f32 %v512, %v514
      %625 = vmin.xlane.f32.xlu0 %v624
      %v626 = vpop.xlane.xlu0 %625
      %v627 = vmin.f32 %v518, %v520
      %628 = vmin.xlane.f32.xlu0 %v627
      %v629 = vpop.xlane.xlu0 %628
      %v630 = vmin.f32 %v524, %v526
      %631 = vmin.xlane.f32.xlu0 %v630
      %v632 = vpop.xlane.xlu0 %631
      %v633 = vmin.f32 %v530, %v532
      %634 = vmin.xlane.f32.xlu0 %v633
      %v635 = vpop.xlane.xlu0 %634
      %v636 = vmin.f32 %v536, %v538
      %637 = vmin.xlane.f32.xlu0 %v636
      %v638 = vpop.xlane.xlu0 %637
      %v639 = vmin.f32 %v542, %v544
      %640 = vmin.xlane.f32.xlu0 %v639
      %v641 = vpop.xlane.xlu0 %640
      %v642 = vmin.f32 %v548, %v550
      %643 = vmin.xlane.f32.xlu0 %v642
      %v644 = vpop.xlane.xlu0 %643
      %v645 = vmin.f32 %v554, %v556
      %646 = vmin.xlane.f32.xlu0 %v645
      %v647 = vpop.xlane.xlu0 %646
      %v648 = vmin.f32 %v560, %v562
      %649 = vmin.xlane.f32.xlu0 %v648
      %v650 = vpop.xlane.xlu0 %649
      %v651 = vmin.f32 %v566, %v568
      %652 = vmin.xlane.f32.xlu0 %v651
      %v653 = vpop.xlane.xlu0 %652
      %v654 = vmin.f32 %v572, %v574
      %655 = vmin.xlane.f32.xlu0 %v654
      %v656 = vpop.xlane.xlu0 %655
      %v657 = vmin.f32 %v578, %v580
      %658 = vmin.xlane.f32.xlu0 %v657
      %v659 = vpop.xlane.xlu0 %658
      %v660 = vmin.f32 %v584, %v586
      %661 = vmin.xlane.f32.xlu0 %v660
      %v662 = vpop.xlane.xlu0 %661
      %s663 = smul.u32 %s20, 256
      %s664 = scvt.s32.f32 %s663
      %v665 = vlaneseq
      %v666 = vand.u32 %v665, 127
      %v667 = vadd.s32 %v666, 128
      %v668 = vcvt.s32.f32 %v666
      %v669 = vcvt.s32.f32 %v667
      %v670 = vstv %s664
      %v671 = vadd.f32 %v670, %v668
      %v672 = vadd.f32 %v670, %v669
      %vm673 = vcmp.le.f32.partialorder %v440, %v590
      %vm674 = vcmp.le.f32.partialorder %v442, %v590
      %vm675 = vcmp.le.f32.partialorder %v446, %v593
      %vm676 = vcmp.le.f32.partialorder %v448, %v593
      %vm677 = vcmp.le.f32.partialorder %v452, %v596
      %vm678 = vcmp.le.f32.partialorder %v454, %v596
      %vm679 = vcmp.le.f32.partialorder %v458, %v599
      %vm680 = vcmp.le.f32.partialorder %v460, %v599
      %vm681 = vcmp.le.f32.partialorder %v464, %v602
      %vm682 = vcmp.le.f32.partialorder %v466, %v602
      %vm683 = vcmp.le.f32.partialorder %v470, %v605
      %vm684 = vcmp.le.f32.partialorder %v472, %v605
      %vm685 = vcmp.le.f32.partialorder %v476, %v608
      %vm686 = vcmp.le.f32.partialorder %v478, %v608
      %vm687 = vcmp.le.f32.partialorder %v482, %v611
      %vm688 = vcmp.le.f32.partialorder %v484, %v611
      %vm689 = vcmp.le.f32.partialorder %v488, %v614
      %vm690 = vcmp.le.f32.partialorder %v490, %v614
      %vm691 = vcmp.le.f32.partialorder %v494, %v617
      %vm692 = vcmp.le.f32.partialorder %v496, %v617
      %vm693 = vcmp.le.f32.partialorder %v500, %v620
      %vm694 = vcmp.le.f32.partialorder %v502, %v620
      %vm695 = vcmp.le.f32.partialorder %v506, %v623
      %vm696 = vcmp.le.f32.partialorder %v508, %v623
      %vm697 = vcmp.le.f32.partialorder %v512, %v626
      %vm698 = vcmp.le.f32.partialorder %v514, %v626
      %vm699 = vcmp.le.f32.partialorder %v518, %v629
      %vm700 = vcmp.le.f32.partialorder %v520, %v629
      %vm701 = vcmp.le.f32.partialorder %v524, %v632
      %vm702 = vcmp.le.f32.partialorder %v526, %v632
      %vm703 = vcmp.le.f32.partialorder %v530, %v635
      %vm704 = vcmp.le.f32.partialorder %v532, %v635
      %vm705 = vcmp.le.f32.partialorder %v536, %v638
      %vm706 = vcmp.le.f32.partialorder %v538, %v638
      %vm707 = vcmp.le.f32.partialorder %v542, %v641
      %vm708 = vcmp.le.f32.partialorder %v544, %v641
      %vm709 = vcmp.le.f32.partialorder %v548, %v644
      %vm710 = vcmp.le.f32.partialorder %v550, %v644
      %vm711 = vcmp.le.f32.partialorder %v554, %v647
      %vm712 = vcmp.le.f32.partialorder %v556, %v647
      %vm713 = vcmp.le.f32.partialorder %v560, %v650
      %vm714 = vcmp.le.f32.partialorder %v562, %v650
      %vm715 = vcmp.le.f32.partialorder %v566, %v653
      %vm716 = vcmp.le.f32.partialorder %v568, %v653
      %vm717 = vcmp.le.f32.partialorder %v572, %v656
      %vm718 = vcmp.le.f32.partialorder %v574, %v656
      %vm719 = vcmp.le.f32.partialorder %v578, %v659
      %vm720 = vcmp.le.f32.partialorder %v580, %v659
      %vm721 = vcmp.le.f32.partialorder %v584, %v662
      %vm722 = vcmp.le.f32.partialorder %v586, %v662
      %v723 = vsel %vm673, %v671, inf
      %v724 = vsel %vm674, %v672, inf
      %v725 = vsel %vm675, %v671, inf
      %v726 = vsel %vm676, %v672, inf
      %v727 = vsel %vm677, %v671, inf
      %v728 = vsel %vm678, %v672, inf
      %v729 = vsel %vm679, %v671, inf
      %v730 = vsel %vm680, %v672, inf
      %v731 = vsel %vm681, %v671, inf
      %v732 = vsel %vm682, %v672, inf
      %v733 = vsel %vm683, %v671, inf
      %v734 = vsel %vm684, %v672, inf
      %v735 = vsel %vm685, %v671, inf
      %v736 = vsel %vm686, %v672, inf
      %v737 = vsel %vm687, %v671, inf
      %v738 = vsel %vm688, %v672, inf
      %v739 = vsel %vm689, %v671, inf
      %v740 = vsel %vm690, %v672, inf
      %v741 = vsel %vm691, %v671, inf
      %v742 = vsel %vm692, %v672, inf
      %v743 = vsel %vm693, %v671, inf
      %v744 = vsel %vm694, %v672, inf
      %v745 = vsel %vm695, %v671, inf
      %v746 = vsel %vm696, %v672, inf
      %v747 = vsel %vm697, %v671, inf
      %v748 = vsel %vm698, %v672, inf
      %v749 = vsel %vm699, %v671, inf
      %v750 = vsel %vm700, %v672, inf
      %v751 = vsel %vm701, %v671, inf
      %v752 = vsel %vm702, %v672, inf
      %v753 = vsel %vm703, %v671, inf
      %v754 = vsel %vm704, %v672, inf
      %v755 = vsel %vm705, %v671, inf
      %v756 = vsel %vm706, %v672, inf
      %v757 = vsel %vm707, %v671, inf
      %v758 = vsel %vm708, %v672, inf
      %v759 = vsel %vm709, %v671, inf
      %v760 = vsel %vm710, %v672, inf
      %v761 = vsel %vm711, %v671, inf
      %v762 = vsel %vm712, %v672, inf
      %v763 = vsel %vm713, %v671, inf
      %v764 = vsel %vm714, %v672, inf
      %v765 = vsel %vm715, %v671, inf
      %v766 = vsel %vm716, %v672, inf
      %v767 = vsel %vm717, %v671, inf
      %v768 = vsel %vm718, %v672, inf
      %v769 = vsel %vm719, %v671, inf
      %v770 = vsel %vm720, %v672, inf
      %v771 = vsel %vm721, %v671, inf
      %v772 = vsel %vm722, %v672, inf
      %v773 = vmin.f32 %v723, %v724
      %774 = vmin.xlane.f32.xlu0 %v773
      %v775 = vpop.xlane.xlu0 %774
      %v776 = vmin.f32 %v725, %v726
      %777 = vmin.xlane.f32.xlu0 %v776
      %v778 = vpop.xlane.xlu0 %777
      %v779 = vmin.f32 %v727, %v728
      %780 = vmin.xlane.f32.xlu0 %v779
      %v781 = vpop.xlane.xlu0 %780
      %v782 = vmin.f32 %v729, %v730
      %783 = vmin.xlane.f32.xlu0 %v782
      %v784 = vpop.xlane.xlu0 %783
      %v785 = vmin.f32 %v731, %v732
      %786 = vmin.xlane.f32.xlu0 %v785
      %v787 = vpop.xlane.xlu0 %786
      %v788 = vmin.f32 %v733, %v734
      %789 = vmin.xlane.f32.xlu0 %v788
      %v790 = vpop.xlane.xlu0 %789
      %v791 = vmin.f32 %v735, %v736
      %792 = vmin.xlane.f32.xlu0 %v791
      %v793 = vpop.xlane.xlu0 %792
      %v794 = vmin.f32 %v737, %v738
      %795 = vmin.xlane.f32.xlu0 %v794
      %v796 = vpop.xlane.xlu0 %795
      %v797 = vmin.f32 %v739, %v740
      %798 = vmin.xlane.f32.xlu0 %v797
      %v799 = vpop.xlane.xlu0 %798
      %v800 = vmin.f32 %v741, %v742
      %801 = vmin.xlane.f32.xlu0 %v800
      %v802 = vpop.xlane.xlu0 %801
      %v803 = vmin.f32 %v743, %v744
      %804 = vmin.xlane.f32.xlu0 %v803
      %v805 = vpop.xlane.xlu0 %804
      %v806 = vmin.f32 %v745, %v746
      %807 = vmin.xlane.f32.xlu0 %v806
      %v808 = vpop.xlane.xlu0 %807
      %v809 = vmin.f32 %v747, %v748
      %810 = vmin.xlane.f32.xlu0 %v809
      %v811 = vpop.xlane.xlu0 %810
      %v812 = vmin.f32 %v749, %v750
      %813 = vmin.xlane.f32.xlu0 %v812
      %v814 = vpop.xlane.xlu0 %813
      %v815 = vmin.f32 %v751, %v752
      %816 = vmin.xlane.f32.xlu0 %v815
      %v817 = vpop.xlane.xlu0 %816
      %v818 = vmin.f32 %v753, %v754
      %819 = vmin.xlane.f32.xlu0 %v818
      %v820 = vpop.xlane.xlu0 %819
      %v821 = vmin.f32 %v755, %v756
      %822 = vmin.xlane.f32.xlu0 %v821
      %v823 = vpop.xlane.xlu0 %822
      %v824 = vmin.f32 %v757, %v758
      %825 = vmin.xlane.f32.xlu0 %v824
      %v826 = vpop.xlane.xlu0 %825
      %v827 = vmin.f32 %v759, %v760
      %828 = vmin.xlane.f32.xlu0 %v827
      %v829 = vpop.xlane.xlu0 %828
      %v830 = vmin.f32 %v761, %v762
      %831 = vmin.xlane.f32.xlu0 %v830
      %v832 = vpop.xlane.xlu0 %831
      %v833 = vmin.f32 %v763, %v764
      %834 = vmin.xlane.f32.xlu0 %v833
      %v835 = vpop.xlane.xlu0 %834
      %v836 = vmin.f32 %v765, %v766
      %837 = vmin.xlane.f32.xlu0 %v836
      %v838 = vpop.xlane.xlu0 %837
      %v839 = vmin.f32 %v767, %v768
      %840 = vmin.xlane.f32.xlu0 %v839
      %v841 = vpop.xlane.xlu0 %840
      %v842 = vmin.f32 %v769, %v770
      %843 = vmin.xlane.f32.xlu0 %v842
      %v844 = vpop.xlane.xlu0 %843
      %v845 = vmin.f32 %v771, %v772
      %846 = vmin.xlane.f32.xlu0 %v845
      %v847 = vpop.xlane.xlu0 %846
      %v848 = vld [vmem:[#allocation2] sm:$0xff]
      %v849 = vld [vmem:[#allocation2 + $0x8] sm:$0xff]
      %v850 = vld [vmem:[#allocation2 + $0x10] sm:$0xff]
      %v851 = vld [vmem:[#allocation2 + $0x18] sm:$0xff]
      %v852 = vld [vmem:[#allocation2 + $0x20] sm:$0xff]
      %v853 = vld [vmem:[#allocation2 + $0x28] sm:$0xff]
      %v854 = vld [vmem:[#allocation2 + $0x30] sm:$0xff]
      %v855 = vld [vmem:[#allocation2 + $0x38] sm:$0xff]
      %v856 = vld [vmem:[#allocation2 + $0x40] sm:$0xff]
      %v857 = vld [vmem:[#allocation2 + $0x48] sm:$0xff]
      %v858 = vld [vmem:[#allocation2 + $0x50] sm:$0xff]
      %v859 = vld [vmem:[#allocation2 + $0x58] sm:$0xff]
      %v860 = vld [vmem:[#allocation2 + $0x60] sm:$0xff]
      %v861 = vld [vmem:[#allocation2 + $0x68] sm:$0xff]
      %v862 = vld [vmem:[#allocation2 + $0x70] sm:$0xff]
      %v863 = vld [vmem:[#allocation2 + $0x78] sm:$0xff]
      %v864 = vld [vmem:[#allocation2 + $0x80] sm:$0xff]
      %v865 = vld [vmem:[#allocation2 + $0x88] sm:$0xff]
      %v866 = vld [vmem:[#allocation2 + $0x90] sm:$0xff]
      %v867 = vld [vmem:[#allocation2 + $0x98] sm:$0xff]
      %v868 = vld [vmem:[#allocation2 + $0xa0] sm:$0xff]
      %v869 = vld [vmem:[#allocation2 + $0xa8] sm:$0xff]
      %v870 = vld [vmem:[#allocation2 + $0xb0] sm:$0xff]
      %v871 = vld [vmem:[#allocation2 + $0xb8] sm:$0xff]
      %v872 = vld [vmem:[#allocation2 + $0xc0] sm:$0xff]
      %vm873 = vcmp.lt.f32.partialorder %v590, %v848
      %vm874 = vcmp.lt.f32.partialorder %v593, %v849
      %vm875 = vcmp.lt.f32.partialorder %v596, %v850
      %vm876 = vcmp.lt.f32.partialorder %v599, %v851
      %vm877 = vcmp.lt.f32.partialorder %v602, %v852
      %vm878 = vcmp.lt.f32.partialorder %v605, %v853
      %vm879 = vcmp.lt.f32.partialorder %v608, %v854
      %vm880 = vcmp.lt.f32.partialorder %v611, %v855
      %vm881 = vcmp.lt.f32.partialorder %v614, %v856
      %vm882 = vcmp.lt.f32.partialorder %v617, %v857
      %vm883 = vcmp.lt.f32.partialorder %v620, %v858
      %vm884 = vcmp.lt.f32.partialorder %v623, %v859
      %vm885 = vcmp.lt.f32.partialorder %v626, %v860
      %vm886 = vcmp.lt.f32.partialorder %v629, %v861
      %vm887 = vcmp.lt.f32.partialorder %v632, %v862
      %vm888 = vcmp.lt.f32.partialorder %v635, %v863
      %vm889 = vcmp.lt.f32.partialorder %v638, %v864
      %vm890 = vcmp.lt.f32.partialorder %v641, %v865
      %vm891 = vcmp.lt.f32.partialorder %v644, %v866
      %vm892 = vcmp.lt.f32.partialorder %v647, %v867
      %vm893 = vcmp.lt.f32.partialorder %v650, %v868
      %vm894 = vcmp.lt.f32.partialorder %v653, %v869
      %vm895 = vcmp.lt.f32.partialorder %v656, %v870
      %vm896 = vcmp.lt.f32.partialorder %v659, %v871
      %vm897 = vcmp.lt.f32.partialorder %v662, %v872
      %v898 = vld [vmem:[#allocation3] sm:$0xff]
      %v899 = vld [vmem:[#allocation3 + $0x8] sm:$0xff]
      %v900 = vld [vmem:[#allocation3 + $0x10] sm:$0xff]
      %v901 = vld [vmem:[#allocation3 + $0x18] sm:$0xff]
      %v902 = vld [vmem:[#allocation3 + $0x20] sm:$0xff]
      %v903 = vld [vmem:[#allocation3 + $0x28] sm:$0xff]
      %v904 = vld [vmem:[#allocation3 + $0x30] sm:$0xff]
      %v905 = vld [vmem:[#allocation3 + $0x38] sm:$0xff]
      %v906 = vld [vmem:[#allocation3 + $0x40] sm:$0xff]
      %v907 = vld [vmem:[#allocation3 + $0x48] sm:$0xff]
      %v908 = vld [vmem:[#allocation3 + $0x50] sm:$0xff]
      %v909 = vld [vmem:[#allocation3 + $0x58] sm:$0xff]
      %v910 = vld [vmem:[#allocation3 + $0x60] sm:$0xff]
      %v911 = vld [vmem:[#allocation3 + $0x68] sm:$0xff]
      %v912 = vld [vmem:[#allocation3 + $0x70] sm:$0xff]
      %v913 = vld [vmem:[#allocation3 + $0x78] sm:$0xff]
      %v914 = vld [vmem:[#allocation3 + $0x80] sm:$0xff]
      %v915 = vld [vmem:[#allocation3 + $0x88] sm:$0xff]
      %v916 = vld [vmem:[#allocation3 + $0x90] sm:$0xff]
      %v917 = vld [vmem:[#allocation3 + $0x98] sm:$0xff]
      %v918 = vld [vmem:[#allocation3 + $0xa0] sm:$0xff]
      %v919 = vld [vmem:[#allocation3 + $0xa8] sm:$0xff]
      %v920 = vld [vmem:[#allocation3 + $0xb0] sm:$0xff]
      %v921 = vld [vmem:[#allocation3 + $0xb8] sm:$0xff]
      %v922 = vld [vmem:[#allocation3 + $0xc0] sm:$0xff]
      %v923 = vsel %vm873, %v775, %v898
      %v924 = vsel %vm874, %v778, %v899
      %v925 = vsel %vm875, %v781, %v900
      %v926 = vsel %vm876, %v784, %v901
      %v927 = vsel %vm877, %v787, %v902
      %v928 = vsel %vm878, %v790, %v903
      %v929 = vsel %vm879, %v793, %v904
      %v930 = vsel %vm880, %v796, %v905
      %v931 = vsel %vm881, %v799, %v906
      %v932 = vsel %vm882, %v802, %v907
      %v933 = vsel %vm883, %v805, %v908
      %v934 = vsel %vm884, %v808, %v909
      %v935 = vsel %vm885, %v811, %v910
      %v936 = vsel %vm886, %v814, %v911
      %v937 = vsel %vm887, %v817, %v912
      %v938 = vsel %vm888, %v820, %v913
      %v939 = vsel %vm889, %v823, %v914
      %v940 = vsel %vm890, %v826, %v915
      %v941 = vsel %vm891, %v829, %v916
      %v942 = vsel %vm892, %v832, %v917
      %v943 = vsel %vm893, %v835, %v918
      %v944 = vsel %vm894, %v838, %v919
      %v945 = vsel %vm895, %v841, %v920
      %v946 = vsel %vm896, %v844, %v921
      %v947 = vsel %vm897, %v847, %v922
      %vm948 = vcmask 7168
      %949 = vst.msk [vmem:[#allocation3] sm:$0xff] %vm948, %v923
      %950 = vst.msk [vmem:[#allocation3 + $0x8] sm:$0xff] %vm948, %v924
      %951 = vst.msk [vmem:[#allocation3 + $0x10] sm:$0xff] %vm948, %v925
      %952 = vst.msk [vmem:[#allocation3 + $0x18] sm:$0xff] %vm948, %v926
      %953 = vst.msk [vmem:[#allocation3 + $0x20] sm:$0xff] %vm948, %v927
      %954 = vst.msk [vmem:[#allocation3 + $0x28] sm:$0xff] %vm948, %v928
      %955 = vst.msk [vmem:[#allocation3 + $0x30] sm:$0xff] %vm948, %v929
      %956 = vst.msk [vmem:[#allocation3 + $0x38] sm:$0xff] %vm948, %v930
      %957 = vst.msk [vmem:[#allocation3 + $0x40] sm:$0xff] %vm948, %v931
      %958 = vst.msk [vmem:[#allocation3 + $0x48] sm:$0xff] %vm948, %v932
      %959 = vst.msk [vmem:[#allocation3 + $0x50] sm:$0xff] %vm948, %v933
      %960 = vst.msk [vmem:[#allocation3 + $0x58] sm:$0xff] %vm948, %v934
      %961 = vst.msk [vmem:[#allocation3 + $0x60] sm:$0xff] %vm948, %v935
      %962 = vst.msk [vmem:[#allocation3 + $0x68] sm:$0xff] %vm948, %v936
      %963 = vst.msk [vmem:[#allocation3 + $0x70] sm:$0xff] %vm948, %v937
      %964 = vst.msk [vmem:[#allocation3 + $0x78] sm:$0xff] %vm948, %v938
      %965 = vst.msk [vmem:[#allocation3 + $0x80] sm:$0xff] %vm948, %v939
      %966 = vst.msk [vmem:[#allocation3 + $0x88] sm:$0xff] %vm948, %v940
      %967 = vst.msk [vmem:[#allocation3 + $0x90] sm:$0xff] %vm948, %v941
      %968 = vst.msk [vmem:[#allocation3 + $0x98] sm:$0xff] %vm948, %v942
      %969 = vst.msk [vmem:[#allocation3 + $0xa0] sm:$0xff] %vm948, %v943
      %970 = vst.msk [vmem:[#allocation3 + $0xa8] sm:$0xff] %vm948, %v944
      %971 = vst.msk [vmem:[#allocation3 + $0xb0] sm:$0xff] %vm948, %v945
      %972 = vst.msk [vmem:[#allocation3 + $0xb8] sm:$0xff] %vm948, %v946
      %973 = vst.msk [vmem:[#allocation3 + $0xc0] sm:$0xff] %vm948, %v947
      %v974 = vld [vmem:[#allocation2] sm:$0xff]
      %v975 = vld [vmem:[#allocation2 + $0x8] sm:$0xff]
      %v976 = vld [vmem:[#allocation2 + $0x10] sm:$0xff]
      %v977 = vld [vmem:[#allocation2 + $0x18] sm:$0xff]
      %v978 = vld [vmem:[#allocation2 + $0x20] sm:$0xff]
      %v979 = vld [vmem:[#allocation2 + $0x28] sm:$0xff]
      %v980 = vld [vmem:[#allocation2 + $0x30] sm:$0xff]
      %v981 = vld [vmem:[#allocation2 + $0x38] sm:$0xff]
      %v982 = vld [vmem:[#allocation2 + $0x40] sm:$0xff]
      %v983 = vld [vmem:[#allocation2 + $0x48] sm:$0xff]
      %v984 = vld [vmem:[#allocation2 + $0x50] sm:$0xff]
      %v985 = vld [vmem:[#allocation2 + $0x58] sm:$0xff]
      %v986 = vld [vmem:[#allocation2 + $0x60] sm:$0xff]
      %v987 = vld [vmem:[#allocation2 + $0x68] sm:$0xff]
      %v988 = vld [vmem:[#allocation2 + $0x70] sm:$0xff]
      %v989 = vld [vmem:[#allocation2 + $0x78] sm:$0xff]
      %v990 = vld [vmem:[#allocation2 + $0x80] sm:$0xff]
      %v991 = vld [vmem:[#allocation2 + $0x88] sm:$0xff]
      %v992 = vld [vmem:[#allocation2 + $0x90] sm:$0xff]
      %v993 = vld [vmem:[#allocation2 + $0x98] sm:$0xff]
      %v994 = vld [vmem:[#allocation2 + $0xa0] sm:$0xff]
      %v995 = vld [vmem:[#allocation2 + $0xa8] sm:$0xff]
      %v996 = vld [vmem:[#allocation2 + $0xb0] sm:$0xff]
      %v997 = vld [vmem:[#allocation2 + $0xb8] sm:$0xff]
      %v998 = vld [vmem:[#allocation2 + $0xc0] sm:$0xff]
      %v999 = vsel %vm873, %v590, %v974
      %v1000 = vsel %vm874, %v593, %v975
      %v1001 = vsel %vm875, %v596, %v976
      %v1002 = vsel %vm876, %v599, %v977
      %v1003 = vsel %vm877, %v602, %v978
      %v1004 = vsel %vm878, %v605, %v979
      %v1005 = vsel %vm879, %v608, %v980
      %v1006 = vsel %vm880, %v611, %v981
      %v1007 = vsel %vm881, %v614, %v982
      %v1008 = vsel %vm882, %v617, %v983
      %v1009 = vsel %vm883, %v620, %v984
      %v1010 = vsel %vm884, %v623, %v985
      %v1011 = vsel %vm885, %v626, %v986
      %v1012 = vsel %vm886, %v629, %v987
      %v1013 = vsel %vm887, %v632, %v988
      %v1014 = vsel %vm888, %v635, %v989
      %v1015 = vsel %vm889, %v638, %v990
      %v1016 = vsel %vm890, %v641, %v991
      %v1017 = vsel %vm891, %v644, %v992
      %v1018 = vsel %vm892, %v647, %v993
      %v1019 = vsel %vm893, %v650, %v994
      %v1020 = vsel %vm894, %v653, %v995
      %v1021 = vsel %vm895, %v656, %v996
      %v1022 = vsel %vm896, %v659, %v997
      %v1023 = vsel %vm897, %v662, %v998
      %1024 = vst.msk [vmem:[#allocation2] sm:$0xff] %vm948, %v999
      %1025 = vst.msk [vmem:[#allocation2 + $0x8] sm:$0xff] %vm948, %v1000
      %1026 = vst.msk [vmem:[#allocation2 + $0x10] sm:$0xff] %vm948, %v1001
      %1027 = vst.msk [vmem:[#allocation2 + $0x18] sm:$0xff] %vm948, %v1002
      %1028 = vst.msk [vmem:[#allocation2 + $0x20] sm:$0xff] %vm948, %v1003
      %1029 = vst.msk [vmem:[#allocation2 + $0x28] sm:$0xff] %vm948, %v1004
      %1030 = vst.msk [vmem:[#allocation2 + $0x30] sm:$0xff] %vm948, %v1005
      %1031 = vst.msk [vmem:[#allocation2 + $0x38] sm:$0xff] %vm948, %v1006
      %1032 = vst.msk [vmem:[#allocation2 + $0x40] sm:$0xff] %vm948, %v1007
      %1033 = vst.msk [vmem:[#allocation2 + $0x48] sm:$0xff] %vm948, %v1008
      %1034 = vst.msk [vmem:[#allocation2 + $0x50] sm:$0xff] %vm948, %v1009
      %1035 = vst.msk [vmem:[#allocation2 + $0x58] sm:$0xff] %vm948, %v1010
      %1036 = vst.msk [vmem:[#allocation2 + $0x60] sm:$0xff] %vm948, %v1011
      %1037 = vst.msk [vmem:[#allocation2 + $0x68] sm:$0xff] %vm948, %v1012
      %1038 = vst.msk [vmem:[#allocation2 + $0x70] sm:$0xff] %vm948, %v1013
      %1039 = vst.msk [vmem:[#allocation2 + $0x78] sm:$0xff] %vm948, %v1014
      %1040 = vst.msk [vmem:[#allocation2 + $0x80] sm:$0xff] %vm948, %v1015
      %1041 = vst.msk [vmem:[#allocation2 + $0x88] sm:$0xff] %vm948, %v1016
      %1042 = vst.msk [vmem:[#allocation2 + $0x90] sm:$0xff] %vm948, %v1017
      %1043 = vst.msk [vmem:[#allocation2 + $0x98] sm:$0xff] %vm948, %v1018
      %1044 = vst.msk [vmem:[#allocation2 + $0xa0] sm:$0xff] %vm948, %v1019
      %1045 = vst.msk [vmem:[#allocation2 + $0xa8] sm:$0xff] %vm948, %v1020
      %1046 = vst.msk [vmem:[#allocation2 + $0xb0] sm:$0xff] %vm948, %v1021
      %1047 = vst.msk [vmem:[#allocation2 + $0xb8] sm:$0xff] %vm948, %v1022
      %1048 = vst.msk [vmem:[#allocation2 + $0xc0] sm:$0xff] %vm948, %v1023
      // Predicated region
      $region33: #{tpu_custom_call.1} parent=27 // pred_check
        %p1049 = pneg %p209
      $region34: #{tpu_custom_call.1} parent=27 // pred_check_branch
        %1051 = sbr.rel (%p1049) target = $region36
      $region35: #{tpu_custom_call.1} parent=27 // pred_region
        %v1052 = vld [vmem:[#allocation3] sm:$0xff]
        %v1053 = vld [vmem:[#allocation3 + $0x8] sm:$0xff]
        %v1054 = vld [vmem:[#allocation3 + $0x10] sm:$0xff]
        %v1055 = vld [vmem:[#allocation3 + $0x18] sm:$0xff]
        %v1056 = vld [vmem:[#allocation3 + $0x20] sm:$0xff]
        %v1057 = vld [vmem:[#allocation3 + $0x28] sm:$0xff]
        %v1058 = vld [vmem:[#allocation3 + $0x30] sm:$0xff]
        %v1059 = vld [vmem:[#allocation3 + $0x38] sm:$0xff]
        %v1060 = vld [vmem:[#allocation3 + $0x40] sm:$0xff]
        %v1061 = vld [vmem:[#allocation3 + $0x48] sm:$0xff]
        %v1062 = vld [vmem:[#allocation3 + $0x50] sm:$0xff]
        %v1063 = vld [vmem:[#allocation3 + $0x58] sm:$0xff]
        %v1064 = vld [vmem:[#allocation3 + $0x60] sm:$0xff]
        %v1065 = vld [vmem:[#allocation3 + $0x68] sm:$0xff]
        %v1066 = vld [vmem:[#allocation3 + $0x70] sm:$0xff]
        %v1067 = vld [vmem:[#allocation3 + $0x78] sm:$0xff]
        %v1068 = vld [vmem:[#allocation3 + $0x80] sm:$0xff]
        %v1069 = vld [vmem:[#allocation3 + $0x88] sm:$0xff]
        %v1070 = vld [vmem:[#allocation3 + $0x90] sm:$0xff]
        %v1071 = vld [vmem:[#allocation3 + $0x98] sm:$0xff]
        %v1072 = vld [vmem:[#allocation3 + $0xa0] sm:$0xff]
        %v1073 = vld [vmem:[#allocation3 + $0xa8] sm:$0xff]
        %v1074 = vld [vmem:[#allocation3 + $0xb0] sm:$0xff]
        %v1075 = vld [vmem:[#allocation3 + $0xb8] sm:$0xff]
        %v1076 = vld [vmem:[#allocation3 + $0xc0] sm:$0xff]
        %v1077 = vcvt.f32.s32.to.zero.pseudo %v1052
        %v1078 = vcvt.f32.s32.to.zero.pseudo %v1053
        %v1079 = vcvt.f32.s32.to.zero.pseudo %v1054
        %v1080 = vcvt.f32.s32.to.zero.pseudo %v1055
        %v1081 = vcvt.f32.s32.to.zero.pseudo %v1056
        %v1082 = vcvt.f32.s32.to.zero.pseudo %v1057
        %v1083 = vcvt.f32.s32.to.zero.pseudo %v1058
        %v1084 = vcvt.f32.s32.to.zero.pseudo %v1059
        %v1085 = vcvt.f32.s32.to.zero.pseudo %v1060
        %v1086 = vcvt.f32.s32.to.zero.pseudo %v1061
        %v1087 = vcvt.f32.s32.to.zero.pseudo %v1062
        %v1088 = vcvt.f32.s32.to.zero.pseudo %v1063
        %v1089 = vcvt.f32.s32.to.zero.pseudo %v1064
        %v1090 = vcvt.f32.s32.to.zero.pseudo %v1065
        %v1091 = vcvt.f32.s32.to.zero.pseudo %v1066
        %v1092 = vcvt.f32.s32.to.zero.pseudo %v1067
        %v1093 = vcvt.f32.s32.to.zero.pseudo %v1068
        %v1094 = vcvt.f32.s32.to.zero.pseudo %v1069
        %v1095 = vcvt.f32.s32.to.zero.pseudo %v1070
        %v1096 = vcvt.f32.s32.to.zero.pseudo %v1071
        %v1097 = vcvt.f32.s32.to.zero.pseudo %v1072
        %v1098 = vcvt.f32.s32.to.zero.pseudo %v1073
        %v1099 = vcvt.f32.s32.to.zero.pseudo %v1074
        %v1100 = vcvt.f32.s32.to.zero.pseudo %v1075
        %v1101 = vcvt.f32.s32.to.zero.pseudo %v1076
        %1102 = vst.msk [vmem:[%s208] sm:$0xff] %vm948, %v1077
        %1103 = vst.msk [vmem:[%s208 + $0x8] sm:$0xff] %vm948, %v1078
        %1104 = vst.msk [vmem:[%s208 + $0x10] sm:$0xff] %vm948, %v1079
        %1105 = vst.msk [vmem:[%s208 + $0x18] sm:$0xff] %vm948, %v1080
        %1106 = vst.msk [vmem:[%s208 + $0x20] sm:$0xff] %vm948, %v1081
        %1107 = vst.msk [vmem:[%s208 + $0x28] sm:$0xff] %vm948, %v1082
        %1108 = vst.msk [vmem:[%s208 + $0x30] sm:$0xff] %vm948, %v1083
        %1109 = vst.msk [vmem:[%s208 + $0x38] sm:$0xff] %vm948, %v1084
        %1110 = vst.msk [vmem:[%s208 + $0x40] sm:$0xff] %vm948, %v1085
        %1111 = vst.msk [vmem:[%s208 + $0x48] sm:$0xff] %vm948, %v1086
        %1112 = vst.msk [vmem:[%s208 + $0x50] sm:$0xff] %vm948, %v1087
        %1113 = vst.msk [vmem:[%s208 + $0x58] sm:$0xff] %vm948, %v1088
        %1114 = vst.msk [vmem:[%s208 + $0x60] sm:$0xff] %vm948, %v1089
        %1115 = vst.msk [vmem:[%s208 + $0x68] sm:$0xff] %vm948, %v1090
        %1116 = vst.msk [vmem:[%s208 + $0x70] sm:$0xff] %vm948, %v1091
        %1117 = vst.msk [vmem:[%s208 + $0x78] sm:$0xff] %vm948, %v1092
        %1118 = vst.msk [vmem:[%s208 + $0x80] sm:$0xff] %vm948, %v1093
        %1119 = vst.msk [vmem:[%s208 + $0x88] sm:$0xff] %vm948, %v1094
        %1120 = vst.msk [vmem:[%s208 + $0x90] sm:$0xff] %vm948, %v1095
        %1121 = vst.msk [vmem:[%s208 + $0x98] sm:$0xff] %vm948, %v1096
        %1122 = vst.msk [vmem:[%s208 + $0xa0] sm:$0xff] %vm948, %v1097
        %1123 = vst.msk [vmem:[%s208 + $0xa8] sm:$0xff] %vm948, %v1098
        %1124 = vst.msk [vmem:[%s208 + $0xb0] sm:$0xff] %vm948, %v1099
        %1125 = vst.msk [vmem:[%s208 + $0xb8] sm:$0xff] %vm948, %v1100
        %1126 = vst.msk [vmem:[%s208 + $0xc0] sm:$0xff] %vm948, %v1101
      $region36: #{tpu_custom_call.1} parent=27 // pred_fallthru
        _
      %p1127 = scmp.lt.s32.totalorder %s18, 1
      %s1128 = scalar_select %p1127, %s18, 1
      %p1129 = scmp.lt.s32.totalorder %s19, 0
      %s1130 = scalar_select %p1129, %s19, 0
      %s1131 = smul.addr %s1130, 25
      %s1132 = smul.addr %s1128, 25
      %s1133 = sadd.s32 %s1131, %s1132
      %s1134 = smul.addr %s1133, 8
      %s1135 = scalar_lea.vmem %s2, %s1134
      // Predicated region
      $region37: #{tpu_custom_call.1} parent=27 // pred_check
        %p1136 = pneg %p106
      $region38: #{tpu_custom_call.1} parent=27 // pred_check_branch
        %1138 = sbr.rel (%p1136) target = $region40
      $region39: #{tpu_custom_call.1} parent=27 // pred_region
        _
      $region40: #{tpu_custom_call.1} parent=27 // pred_fallthru
        _
    $region28: #{tpu_custom_call.1} parent=5 // pred_fallthru
      _
    %p1139 = scmp.le.s32.totalorder 2, %s8
    // Predicated region
    $region41: #{tpu_custom_call.1} parent=5 // pred_check
      %p1140 = pneg %p1139
    $region42: #{tpu_custom_call.1} parent=5 // pred_check_branch
      %1142 = sbr.rel (%p1140) target = $region44
    $region43: #{tpu_custom_call.1} parent=5 // pred_region
      %s1143 = ssub.s32 %s8, 2
      // Predicated region
      $region45: #{tpu_custom_call.1} parent=43 // pred_check
        %p1144 = pneg %p112
      $region46: #{tpu_custom_call.1} parent=43 // pred_check_branch
        %1146 = sbr.rel (%p1144) target = $region48
      $region47: #{tpu_custom_call.1} parent=43 // pred_region
        %p1147 = scmp.lt.s32.totalorder %s21, 1
        %s1148 = scalar_select %p1147, %s21, 1
        %p1149 = scmp.lt.s32.totalorder %s22, 0
        %s1150 = scalar_select %p1149, %s22, 0
        %s1151 = smul.addr %s1150, 25
        %s1152 = smul.addr %s1148, 25
        %s1153 = sadd.s32 %s1151, %s1152
        %s1154 = smul.addr %s1153, 8
        %s1155 = scalar_lea.vmem %s2, %s1154
      $region48: #{tpu_custom_call.1} parent=43 // pred_fallthru
        _
    $region44: #{tpu_custom_call.1} parent=5 // pred_fallthru
      _
  $region6: #{tpu_custom_call.1} parent=0 // loop_footer
    %s12 = sadd.s32 1, %s8
  $region7: #{tpu_custom_call.1} parent=0 // loop_footer_branch
    %7 = sbr.rel target = $region3
  $region8: #{tpu_custom_call.1} parent=0 // loop_exit
    _

</llo_original>
